<compile_context>
chip_gen: v7x
topology: tpu7x:2x2x1
jax: 0.10.0
libtpu: 0.0.40
codegen_flags: <defaults>
</compile_context>

<pallas_src>
import functools

import jax
import jax.numpy as jnp
from jax.experimental import pallas as pl
from jax.experimental.pallas import tpu as pltpu

HIDDEN = 64
OUT = 3


def _mlp_kernel(x_ref, w1_ref, b1_ref, w2_ref, b2_ref,
                w3_ref, b3_ref, w4_ref, b4_ref, o_ref):
    """Feature-major layout: batch on the lane axis.

    x_ref : (1, tm)  f32
    w1    : (64, 1)   b1: (64, 1)   (K == 1 layer -> broadcasted multiply, VPU)
    w2/w3 : (64, 64)  b2/b3: (64, 1)
    w4    : (3, 64)   b4: (3, 1)
    o_ref : (3, tm)  f32
    """
    x = x_ref[...]                                         # (1, tm) f32
    # Layer 1: W1 @ x^T with K == 1 is an outer product; keep it on the VPU.
    h = jnp.tanh(w1_ref[...] * x + b1_ref[...])            # (64, tm) f32

    mm_dtype = w2_ref.dtype            # bf16 (MXU-native) or f32, set by wrapper
    h = jnp.tanh(
        jnp.dot(w2_ref[...], h.astype(mm_dtype),
                preferred_element_type=jnp.float32) + b2_ref[...])   # (64, tm)
    h = jnp.tanh(
        jnp.dot(w3_ref[...], h.astype(mm_dtype),
                preferred_element_type=jnp.float32) + b3_ref[...])   # (64, tm)
    logits = (jnp.dot(w4_ref[...], h.astype(mm_dtype),
                      preferred_element_type=jnp.float32) + b4_ref[...])  # (3, tm)
    o_ref[...] = jax.nn.sigmoid(logits).astype(o_ref.dtype)


@functools.partial(jax.jit, static_argnames=("tm", "use_bf16_matmul"))
def net_sir_forward(x, params, *, tm=512, use_bf16_matmul=True):
    """x: (N, 1) float32. Returns (N, 3) float32 (same semantics as Net_SIR)."""
    assert tm % 128 == 0, "tm must be a multiple of the 128-lane width"
    w1, b1, w2, b2, w3, b3, w4, b4 = params   # PyTorch layout: W (out,in), b (out,)
    N = x.shape[0]
    n_blocks = max(pl.cdiv(N, tm), 1)
    n_pad = n_blocks * tm

    # Batch onto the lane axis, zero-padded to a multiple of tm: (N,1) -> (1, n_pad)
    xt = jnp.zeros((1, n_pad), jnp.float32).at[0, :N].set(x[:, 0].astype(jnp.float32))

    mm_dtype = jnp.bfloat16 if use_bf16_matmul else jnp.float32
    w2c, w3c, w4c = (w.astype(mm_dtype) for w in (w2, w3, w4))
    w1c = w1.astype(jnp.float32)                               # (64, 1), stays f32
    b1c, b2c, b3c, b4c = (b.reshape(-1, 1).astype(jnp.float32)
                          for b in (b1, b2, b3, b4))

    full = lambda i: (0, 0)   # weights / biases are not tiled (resident in VMEM)
    grid_spec = pltpu.PrefetchScalarGridSpec(
        num_scalar_prefetch=0,
        grid=(n_blocks,),
        in_specs=[
            pl.BlockSpec((1, tm), lambda i: (0, i)),           # x tile (lane-dense)
            pl.BlockSpec((HIDDEN, 1), full),                   # W1
            pl.BlockSpec((HIDDEN, 1), full),                   # b1
            pl.BlockSpec((HIDDEN, HIDDEN), full),              # W2
            pl.BlockSpec((HIDDEN, 1), full),                   # b2
            pl.BlockSpec((HIDDEN, HIDDEN), full),              # W3
            pl.BlockSpec((HIDDEN, 1), full),                   # b3
            pl.BlockSpec((OUT, HIDDEN), full),                 # W4
            pl.BlockSpec((OUT, 1), full),                      # b4
        ],
        out_specs=pl.BlockSpec((OUT, tm), lambda i: (0, i)),   # lane-dense stores
    )

    out_t = pl.pallas_call(
        _mlp_kernel,
        out_shape=jax.ShapeDtypeStruct((OUT, n_pad), jnp.float32),
        grid_spec=grid_spec,
        compiler_params=pltpu.CompilerParams(
            dimension_semantics=("parallel",)),                # megacore-shardable
    )(xt, w1c, b1c, w2c, b2c, w3c, b3c, w4c, b4c)

    return out_t[:, :N].T                                      # back to (N, 3)


def init_params(key):
    """PyTorch-layout params for Net_SIR: W (out_features, in_features), b (out,)."""
    dims = [(HIDDEN, 1), (HIDDEN, HIDDEN), (HIDDEN, HIDDEN), (OUT, HIDDEN)]
    params = []
    for (fan_out, fan_in) in dims:
        key, kw, kb = jax.random.split(key, 3)
        bound = 1.0 / (float(fan_in) ** 0.5)   # PyTorch default nn.Linear init range
        w = jax.random.uniform(kw, (fan_out, fan_in), jnp.float32,
                               minval=-bound, maxval=bound)
        b = jax.random.uniform(kb, (fan_out,), jnp.float32,
                               minval=-bound, maxval=bound)
        params += [w, b]
    return tuple(params)


def net_sir_reference(x, params, use_bf16_matmul=True):
    """Plain-JAX reference in the standard (N, features) layout."""
    w1, b1, w2, b2, w3, b3, w4, b4 = params
    dt = jnp.bfloat16 if use_bf16_matmul else jnp.float32

    def dense(h, w, b):
        return jnp.dot(h.astype(dt), w.T.astype(dt),
                       preferred_element_type=jnp.float32) + b

    h = jnp.tanh(x @ w1.T + b1)          # K == 1 layer kept in f32 (matches kernel)
    h = jnp.tanh(dense(h, w2, b2))
    h = jnp.tanh(dense(h, w3, b3))
    return jax.nn.sigmoid(dense(h, w4, b4))


if __name__ == "__main__":
    key = jax.random.PRNGKey(0)
    kx, kp = jax.random.split(key)

    # Ragged batch of "time" inputs (exercises the wrapper padding) with a tile
    # size keeping the grid length >= 2 (both TensorCores on v7x stay busy).
    N, tm = 300, 256
    x = jax.random.uniform(kx, (N, 1), jnp.float32, minval=0.0, maxval=1.0)
    params = init_params(kp)

    out = net_sir_forward(x, params, tm=tm, use_bf16_matmul=True)
    out = jax.block_until_ready(out)
    assert out.shape == (N, 3)

    # Tight check against a reference using the same mixed precision
    # (bf16 MXU operands, f32 accumulation, f32 activations).
    ref = net_sir_reference(x, params, use_bf16_matmul=True)
    assert jnp.allclose(out, ref, atol=1e-4, rtol=1e-4), \
        float(jnp.max(jnp.abs(out - ref)))

    # Loose sanity check against the pure-f32 math of the original module.
    ref_f32 = net_sir_reference(x, params, use_bf16_matmul=False)
    assert float(jnp.max(jnp.abs(out - ref_f32))) < 5e-2

    print("KERNEL_OK")
</pallas_src>

<mosaic_0001>
module attributes {stable_mosaic.version = 11 : i64} {
  func.func @_mlp_kernel(%arg0: i32, %arg1: memref<1x256xf32, #tpu.memory_space<vmem>>, %arg2: memref<64x1xf32, #tpu.memory_space<vmem>>, %arg3: memref<64x1xf32, #tpu.memory_space<vmem>>, %arg4: memref<64x64xbf16, #tpu.memory_space<vmem>>, %arg5: memref<64x1xf32, #tpu.memory_space<vmem>>, %arg6: memref<64x64xbf16, #tpu.memory_space<vmem>>, %arg7: memref<64x1xf32, #tpu.memory_space<vmem>>, %arg8: memref<3x64xbf16, #tpu.memory_space<vmem>>, %arg9: memref<3x1xf32, #tpu.memory_space<vmem>>, %arg10: memref<3x256xf32, #tpu.memory_space<vmem>>) attributes {dimension_semantics = [#tpu.dimension_semantics<parallel>], iteration_bounds = array<i64: 2>, scalar_prefetch = 0 : i64, scratch_operands = 0 : i64, tpu.core_type = #tpu.core_type<tc>, window_params = [{transform_indices = @transform_0, window_bounds = array<i64: 1, 256>}, {pipeline_mode = #tpu.pipeline_mode<synchronous>, transform_indices = @transform_1, window_bounds = array<i64: 64, 1>}, {pipeline_mode = #tpu.pipeline_mode<synchronous>, transform_indices = @transform_2, window_bounds = array<i64: 64, 1>}, {pipeline_mode = #tpu.pipeline_mode<synchronous>, transform_indices = @transform_3, window_bounds = array<i64: 64, 64>}, {pipeline_mode = #tpu.pipeline_mode<synchronous>, transform_indices = @transform_4, window_bounds = array<i64: 64, 1>}, {pipeline_mode = #tpu.pipeline_mode<synchronous>, transform_indices = @transform_5, window_bounds = array<i64: 64, 64>}, {pipeline_mode = #tpu.pipeline_mode<synchronous>, transform_indices = @transform_6, window_bounds = array<i64: 64, 1>}, {pipeline_mode = #tpu.pipeline_mode<synchronous>, transform_indices = @transform_7, window_bounds = array<i64: 3, 64>}, {pipeline_mode = #tpu.pipeline_mode<synchronous>, transform_indices = @transform_8, window_bounds = array<i64: 3, 1>}, {transform_indices = @transform_9, window_bounds = array<i64: 3, 256>}]} {
    %c0 = arith.constant 0 : index
    %c0_0 = arith.constant 0 : index
    %0 = vector.load %arg1[%c0, %c0_0] : memref<1x256xf32, #tpu.memory_space<vmem>>, vector<1x256xf32>
    %c0_1 = arith.constant 0 : index
    %c0_2 = arith.constant 0 : index
    %1 = vector.load %arg2[%c0_1, %c0_2] : memref<64x1xf32, #tpu.memory_space<vmem>>, vector<64x1xf32>
    %2 = vector.broadcast %1 : vector<64x1xf32> to vector<64x256xf32>
    %3 = vector.broadcast %0 : vector<1x256xf32> to vector<64x256xf32>
    %4 = arith.mulf %2, %3 : vector<64x256xf32>
    %c0_3 = arith.constant 0 : index
    %c0_4 = arith.constant 0 : index
    %5 = vector.load %arg3[%c0_3, %c0_4] : memref<64x1xf32, #tpu.memory_space<vmem>>, vector<64x1xf32>
    %6 = vector.broadcast %5 : vector<64x1xf32> to vector<64x256xf32>
    %7 = arith.addf %4, %6 : vector<64x256xf32>
    %8 = math.tanh %7 : vector<64x256xf32>
    %c0_5 = arith.constant 0 : index
    %c0_6 = arith.constant 0 : index
    %9 = vector.load %arg4[%c0_5, %c0_6] : memref<64x64xbf16, #tpu.memory_space<vmem>>, vector<64x64xbf16>
    %10 = arith.truncf %8 : vector<64x256xf32> to vector<64x256xbf16>
    %cst = arith.constant dense<0.000000e+00> : vector<64x256xf32>
    %11 = tpu.matmul %9, %10, %cst {dimension_numbers = #tpu.dot_dimension_numbers<[1], [0], [0], [1], [0, 0, 1, 1], [], []>} : vector<64x64xbf16>, vector<64x256xbf16>, vector<64x256xf32> -> vector<64x256xf32>
    %c0_7 = arith.constant 0 : index
    %c0_8 = arith.constant 0 : index
    %12 = vector.load %arg5[%c0_7, %c0_8] : memref<64x1xf32, #tpu.memory_space<vmem>>, vector<64x1xf32>
    %13 = vector.broadcast %12 : vector<64x1xf32> to vector<64x256xf32>
    %14 = arith.addf %11, %13 : vector<64x256xf32>
    %15 = math.tanh %14 : vector<64x256xf32>
    %c0_9 = arith.constant 0 : index
    %c0_10 = arith.constant 0 : index
    %16 = vector.load %arg6[%c0_9, %c0_10] : memref<64x64xbf16, #tpu.memory_space<vmem>>, vector<64x64xbf16>
    %17 = arith.truncf %15 : vector<64x256xf32> to vector<64x256xbf16>
    %cst_11 = arith.constant dense<0.000000e+00> : vector<64x256xf32>
    %18 = tpu.matmul %16, %17, %cst_11 {dimension_numbers = #tpu.dot_dimension_numbers<[1], [0], [0], [1], [0, 0, 1, 1], [], []>} : vector<64x64xbf16>, vector<64x256xbf16>, vector<64x256xf32> -> vector<64x256xf32>
    %c0_12 = arith.constant 0 : index
    %c0_13 = arith.constant 0 : index
    %19 = vector.load %arg7[%c0_12, %c0_13] : memref<64x1xf32, #tpu.memory_space<vmem>>, vector<64x1xf32>
    %20 = vector.broadcast %19 : vector<64x1xf32> to vector<64x256xf32>
    %21 = arith.addf %18, %20 : vector<64x256xf32>
    %22 = math.tanh %21 : vector<64x256xf32>
    %c0_14 = arith.constant 0 : index
    %c0_15 = arith.constant 0 : index
    %23 = vector.load %arg8[%c0_14, %c0_15] : memref<3x64xbf16, #tpu.memory_space<vmem>>, vector<3x64xbf16>
    %24 = arith.truncf %22 : vector<64x256xf32> to vector<64x256xbf16>
    %cst_16 = arith.constant dense<0.000000e+00> : vector<3x256xf32>
    %25 = tpu.matmul %23, %24, %cst_16 {dimension_numbers = #tpu.dot_dimension_numbers<[1], [0], [0], [1], [0, 0, 1, 1], [], []>} : vector<3x64xbf16>, vector<64x256xbf16>, vector<3x256xf32> -> vector<3x256xf32>
    %c0_17 = arith.constant 0 : index
    %c0_18 = arith.constant 0 : index
    %26 = vector.load %arg9[%c0_17, %c0_18] : memref<3x1xf32, #tpu.memory_space<vmem>>, vector<3x1xf32>
    %27 = vector.broadcast %26 : vector<3x1xf32> to vector<3x256xf32>
    %28 = arith.addf %25, %27 : vector<3x256xf32>
    %29 = arith.negf %28 : vector<3x256xf32>
    %30 = math.exp %29 : vector<3x256xf32>
    %cst_19 = arith.constant 1.000000e+00 : f32
    %31 = vector.broadcast %cst_19 : f32 to vector<3x256xf32>
    %32 = arith.addf %31, %30 : vector<3x256xf32>
    %33 = arith.divf %31, %32 : vector<3x256xf32>
    %c0_20 = arith.constant 0 : index
    %c0_21 = arith.constant 0 : index
    %34 = vector.load %arg10[%c0_20, %c0_21] : memref<3x256xf32, #tpu.memory_space<vmem>>, vector<3x256xf32>
    tpu.vector_store %arg10[%c0_20, %c0_21], %33 {strides = array<i32>} : memref<3x256xf32, #tpu.memory_space<vmem>>, vector<3x256xf32>,
    return
  }
  func.func @transform_0(%arg0: i32) -> (i32, i32) {
    %c0_i32 = arith.constant 0 : i32
    %c0_i32_0 = arith.constant 0 : i32
    return %c0_i32, %arg0 : i32, i32
  }
  func.func @transform_1(%arg0: i32) -> (i32, i32) {
    %c0_i32 = arith.constant 0 : i32
    %c0_i32_0 = arith.constant 0 : i32
    %c0_i32_1 = arith.constant 0 : i32
    return %c0_i32, %c0_i32_0 : i32, i32
  }
  func.func @transform_2(%arg0: i32) -> (i32, i32) {
    %c0_i32 = arith.constant 0 : i32
    %c0_i32_0 = arith.constant 0 : i32
    %c0_i32_1 = arith.constant 0 : i32
    return %c0_i32, %c0_i32_0 : i32, i32
  }
  func.func @transform_3(%arg0: i32) -> (i32, i32) {
    %c0_i32 = arith.constant 0 : i32
    %c0_i32_0 = arith.constant 0 : i32
    %c0_i32_1 = arith.constant 0 : i32
    return %c0_i32, %c0_i32_0 : i32, i32
  }
  func.func @transform_4(%arg0: i32) -> (i32, i32) {
    %c0_i32 = arith.constant 0 : i32
    %c0_i32_0 = arith.constant 0 : i32
    %c0_i32_1 = arith.constant 0 : i32
    return %c0_i32, %c0_i32_0 : i32, i32
  }
  func.func @transform_5(%arg0: i32) -> (i32, i32) {
    %c0_i32 = arith.constant 0 : i32
    %c0_i32_0 = arith.constant 0 : i32
    %c0_i32_1 = arith.constant 0 : i32
    return %c0_i32, %c0_i32_0 : i32, i32
  }
  func.func @transform_6(%arg0: i32) -> (i32, i32) {
    %c0_i32 = arith.constant 0 : i32
    %c0_i32_0 = arith.constant 0 : i32
    %c0_i32_1 = arith.constant 0 : i32
    return %c0_i32, %c0_i32_0 : i32, i32
  }
  func.func @transform_7(%arg0: i32) -> (i32, i32) {
    %c0_i32 = arith.constant 0 : i32
    %c0_i32_0 = arith.constant 0 : i32
    %c0_i32_1 = arith.constant 0 : i32
    return %c0_i32, %c0_i32_0 : i32, i32
  }
  func.func @transform_8(%arg0: i32) -> (i32, i32) {
    %c0_i32 = arith.constant 0 : i32
    %c0_i32_0 = arith.constant 0 : i32
    %c0_i32_1 = arith.constant 0 : i32
    return %c0_i32, %c0_i32_0 : i32, i32
  }
  func.func @transform_9(%arg0: i32) -> (i32, i32) {
    %c0_i32 = arith.constant 0 : i32
    %c0_i32_0 = arith.constant 0 : i32
    return %c0_i32, %arg0 : i32, i32
  }
}

</mosaic_0001>

<llo_original>
// kernel: net_sir_forward.1
$region0: #{net_sir_forward.1}
  #allocation0 [shape = 'u32[]', space=smem, size = 0x4, offset = 0x4, fixed_abs, tag = 'smem constant byte address 0x4 - core index']
  #allocation1 [shape = 'u32[144,128]{1,0:T(1,128)}', space=vmem, size = 0x12000, scoped, tag = 'internal scratch']
  %s0 = inlined_call_operand.vmem [shape: f32[1,512], index: 0, kind: input, shape index: {}]
  %s1 = inlined_call_operand.vmem [shape: f32[64,1], index: 1, kind: input, shape index: {}]
  %s2 = inlined_call_operand.vmem [shape: f32[64,1], index: 2, kind: input, shape index: {}]
  %s3 = inlined_call_operand.vmem [shape: bf16[64,64], index: 3, kind: input, shape index: {}]
  %s4 = inlined_call_operand.vmem [shape: f32[64,1], index: 4, kind: input, shape index: {}]
  %s5 = inlined_call_operand.vmem [shape: bf16[64,64], index: 5, kind: input, shape index: {}]
  %s6 = inlined_call_operand.vmem [shape: f32[64,1], index: 6, kind: input, shape index: {}]
  %s7 = inlined_call_operand.vmem [shape: bf16[3,64], index: 7, kind: input, shape index: {}]
  %s8 = inlined_call_operand.vmem [shape: f32[3,1], index: 8, kind: input, shape index: {}]
  %s9 = inlined_call_operand.vmem [shape: f32[3,512], index: 9, kind: output, shape index: {}]
  %s10 = sld [smem:[#allocation0]]
  $region69: #{net_sir_forward.1} parent=0
    _
  %s12 = ssub.s32 1, %s10
  %s13 = scalar_select 0, %s12, %s10
  loop: start=0, step=1, limit=4
  $region2: #{net_sir_forward.1} parent=0 // loop_pre_header
    _
  $region3: #{net_sir_forward.1} parent=0 // loop_header
    %s15 = sphi 0, %s19
    %p16 = scmp.ge.s32.totalorder %s15, 4
    %s25 = sphi 0, %s27
    %s28 = sphi 0, %s25
    %s29 = sphi 0, %s28
    %s45 = sphi 0, %s29
    %s49 = sphi 0, %s49
    %s51 = sphi 0, %s49
    %s52 = sphi 0, %s51
    %s66 = sphi 0, %s52
    %s70 = sphi 0, %s70
    %s72 = sphi 0, %s70
    %s73 = sphi 0, %s72
    %s87 = sphi 0, %s73
    %s91 = sphi 0, %s91
    %s93 = sphi 0, %s91
    %s94 = sphi 0, %s93
    %s108 = sphi 0, %s94
    %s112 = sphi 0, %s112
    %s114 = sphi 0, %s112
    %s115 = sphi 0, %s114
    %s129 = sphi 0, %s115
    %s133 = sphi 0, %s133
    %s135 = sphi 0, %s133
    %s136 = sphi 0, %s135
    %s150 = sphi 0, %s136
    %s154 = sphi 0, %s154
    %s156 = sphi 0, %s154
    %s157 = sphi 0, %s156
    %s171 = sphi 0, %s157
    %s175 = sphi 0, %s175
    %s177 = sphi 0, %s175
    %s178 = sphi 0, %s177
    %s192 = sphi 0, %s178
    %s196 = sphi 0, %s196
    %s198 = sphi 0, %s196
    %s199 = sphi 0, %s198
    %s213 = sphi 0, %s199
    %s219 = sphi 0, %s221
    %s222 = sphi 0, %s219
    %s223 = sphi 0, %s222
    %s239 = sphi 0, %s223
  $region4: #{net_sir_forward.1} parent=0 // loop_header_branch
    %18 = sbr.rel (%p16) target = $region8
  $region5: #{net_sir_forward.1} parent=0 // loop_body
    %s20 = ssub.s32 %s15, 1
    %s21 = ssub.s32 %s15, 2
    %s22 = sadd.s32 %s15, 1
    %s23 = ssub.s32 %s15, %s22
    %p24 = scmp.eq.s32.totalorder %s23, 0
    %s26 = sadd.s32 %s25, 1
    %s27 = scalar_select %p24, %s25, %s26
    %p30 = pneg %p24
    %p31 = scmp.eq.s32.totalorder %s15, 1
    %p32 = por %p30, %p31
    %p33 = scmp.ne.s32.totalorder %s25, %s28
    %p34 = scmp.eq.s32.totalorder %s15, 0
    %p35 = por %p33, %p34
    %p36 = scmp.ne.s32.totalorder %s25, %s28
    %p37 = scmp.eq.s32.totalorder %s20, 1
    %p38 = por %p36, %p37
    %p39 = scmp.ne.s32.totalorder %s28, %s29
    %p40 = scmp.eq.s32.totalorder %s20, 0
    %p41 = por %p39, %p40
    %p42 = scmp.ne.s32.totalorder %s28, %s29
    %p43 = scmp.eq.s32.totalorder %s21, 1
    %p44 = por %p42, %p43
    %p46 = scmp.ne.s32.totalorder %s29, %s45
    %p47 = scmp.eq.s32.totalorder %s21, 0
    %p48 = por %p46, %p47
    %s50 = sadd.s32 %s49, 1
    %p53 = scmp.eq.s32.totalorder %s15, 1
    %p54 = scmp.ne.s32.totalorder %s49, %s51
    %p55 = scmp.eq.s32.totalorder %s15, 0
    %p56 = por %p54, %p55
    %p57 = scmp.ne.s32.totalorder %s49, %s51
    %p58 = scmp.eq.s32.totalorder %s20, 1
    %p59 = por %p57, %p58
    %p60 = scmp.ne.s32.totalorder %s51, %s52
    %p61 = scmp.eq.s32.totalorder %s20, 0
    %p62 = por %p60, %p61
    %p63 = scmp.ne.s32.totalorder %s51, %s52
    %p64 = scmp.eq.s32.totalorder %s21, 1
    %p65 = por %p63, %p64
    %p67 = scmp.ne.s32.totalorder %s52, %s66
    %p68 = scmp.eq.s32.totalorder %s21, 0
    %p69 = por %p67, %p68
    %s71 = sadd.s32 %s70, 1
    %p74 = scmp.eq.s32.totalorder %s15, 1
    %p75 = scmp.ne.s32.totalorder %s70, %s72
    %p76 = scmp.eq.s32.totalorder %s15, 0
    %p77 = por %p75, %p76
    %p78 = scmp.ne.s32.totalorder %s70, %s72
    %p79 = scmp.eq.s32.totalorder %s20, 1
    %p80 = por %p78, %p79
    %p81 = scmp.ne.s32.totalorder %s72, %s73
    %p82 = scmp.eq.s32.totalorder %s20, 0
    %p83 = por %p81, %p82
    %p84 = scmp.ne.s32.totalorder %s72, %s73
    %p85 = scmp.eq.s32.totalorder %s21, 1
    %p86 = por %p84, %p85
    %p88 = scmp.ne.s32.totalorder %s73, %s87
    %p89 = scmp.eq.s32.totalorder %s21, 0
    %p90 = por %p88, %p89
    %s92 = sadd.s32 %s91, 1
    %p95 = scmp.eq.s32.totalorder %s15, 1
    %p96 = scmp.ne.s32.totalorder %s91, %s93
    %p97 = scmp.eq.s32.totalorder %s15, 0
    %p98 = por %p96, %p97
    %p99 = scmp.ne.s32.totalorder %s91, %s93
    %p100 = scmp.eq.s32.totalorder %s20, 1
    %p101 = por %p99, %p100
    %p102 = scmp.ne.s32.totalorder %s93, %s94
    %p103 = scmp.eq.s32.totalorder %s20, 0
    %p104 = por %p102, %p103
    %p105 = scmp.ne.s32.totalorder %s93, %s94
    %p106 = scmp.eq.s32.totalorder %s21, 1
    %p107 = por %p105, %p106
    %p109 = scmp.ne.s32.totalorder %s94, %s108
    %p110 = scmp.eq.s32.totalorder %s21, 0
    %p111 = por %p109, %p110
    %s113 = sadd.s32 %s112, 1
    %p116 = scmp.eq.s32.totalorder %s15, 1
    %p117 = scmp.ne.s32.totalorder %s112, %s114
    %p118 = scmp.eq.s32.totalorder %s15, 0
    %p119 = por %p117, %p118
    %p120 = scmp.ne.s32.totalorder %s112, %s114
    %p121 = scmp.eq.s32.totalorder %s20, 1
    %p122 = por %p120, %p121
    %p123 = scmp.ne.s32.totalorder %s114, %s115
    %p124 = scmp.eq.s32.totalorder %s20, 0
    %p125 = por %p123, %p124
    %p126 = scmp.ne.s32.totalorder %s114, %s115
    %p127 = scmp.eq.s32.totalorder %s21, 1
    %p128 = por %p126, %p127
    %p130 = scmp.ne.s32.totalorder %s115, %s129
    %p131 = scmp.eq.s32.totalorder %s21, 0
    %p132 = por %p130, %p131
    %s134 = sadd.s32 %s133, 1
    %p137 = scmp.eq.s32.totalorder %s15, 1
    %p138 = scmp.ne.s32.totalorder %s133, %s135
    %p139 = scmp.eq.s32.totalorder %s15, 0
    %p140 = por %p138, %p139
    %p141 = scmp.ne.s32.totalorder %s133, %s135
    %p142 = scmp.eq.s32.totalorder %s20, 1
    %p143 = por %p141, %p142
    %p144 = scmp.ne.s32.totalorder %s135, %s136
    %p145 = scmp.eq.s32.totalorder %s20, 0
    %p146 = por %p144, %p145
    %p147 = scmp.ne.s32.totalorder %s135, %s136
    %p148 = scmp.eq.s32.totalorder %s21, 1
    %p149 = por %p147, %p148
    %p151 = scmp.ne.s32.totalorder %s136, %s150
    %p152 = scmp.eq.s32.totalorder %s21, 0
    %p153 = por %p151, %p152
    %s155 = sadd.s32 %s154, 1
    %p158 = scmp.eq.s32.totalorder %s15, 1
    %p159 = scmp.ne.s32.totalorder %s154, %s156
    %p160 = scmp.eq.s32.totalorder %s15, 0
    %p161 = por %p159, %p160
    %p162 = scmp.ne.s32.totalorder %s154, %s156
    %p163 = scmp.eq.s32.totalorder %s20, 1
    %p164 = por %p162, %p163
    %p165 = scmp.ne.s32.totalorder %s156, %s157
    %p166 = scmp.eq.s32.totalorder %s20, 0
    %p167 = por %p165, %p166
    %p168 = scmp.ne.s32.totalorder %s156, %s157
    %p169 = scmp.eq.s32.totalorder %s21, 1
    %p170 = por %p168, %p169
    %p172 = scmp.ne.s32.totalorder %s157, %s171
    %p173 = scmp.eq.s32.totalorder %s21, 0
    %p174 = por %p172, %p173
    %s176 = sadd.s32 %s175, 1
    %p179 = scmp.eq.s32.totalorder %s15, 1
    %p180 = scmp.ne.s32.totalorder %s175, %s177
    %p181 = scmp.eq.s32.totalorder %s15, 0
    %p182 = por %p180, %p181
    %p183 = scmp.ne.s32.totalorder %s175, %s177
    %p184 = scmp.eq.s32.totalorder %s20, 1
    %p185 = por %p183, %p184
    %p186 = scmp.ne.s32.totalorder %s177, %s178
    %p187 = scmp.eq.s32.totalorder %s20, 0
    %p188 = por %p186, %p187
    %p189 = scmp.ne.s32.totalorder %s177, %s178
    %p190 = scmp.eq.s32.totalorder %s21, 1
    %p191 = por %p189, %p190
    %p193 = scmp.ne.s32.totalorder %s178, %s192
    %p194 = scmp.eq.s32.totalorder %s21, 0
    %p195 = por %p193, %p194
    %s197 = sadd.s32 %s196, 1
    %p200 = scmp.eq.s32.totalorder %s15, 1
    %p201 = scmp.ne.s32.totalorder %s196, %s198
    %p202 = scmp.eq.s32.totalorder %s15, 0
    %p203 = por %p201, %p202
    %p204 = scmp.ne.s32.totalorder %s196, %s198
    %p205 = scmp.eq.s32.totalorder %s20, 1
    %p206 = por %p204, %p205
    %p207 = scmp.ne.s32.totalorder %s198, %s199
    %p208 = scmp.eq.s32.totalorder %s20, 0
    %p209 = por %p207, %p208
    %p210 = scmp.ne.s32.totalorder %s198, %s199
    %p211 = scmp.eq.s32.totalorder %s21, 1
    %p212 = por %p210, %p211
    %p214 = scmp.ne.s32.totalorder %s199, %s213
    %p215 = scmp.eq.s32.totalorder %s21, 0
    %p216 = por %p214, %p215
    %s217 = ssub.s32 %s15, %s22
    %p218 = scmp.eq.s32.totalorder %s217, 0
    %s220 = sadd.s32 %s219, 1
    %s221 = scalar_select %p218, %s219, %s220
    %p224 = pneg %p218
    %p225 = scmp.eq.s32.totalorder %s15, 1
    %p226 = por %p224, %p225
    %p227 = scmp.ne.s32.totalorder %s219, %s222
    %p228 = scmp.eq.s32.totalorder %s15, 0
    %p229 = por %p227, %p228
    %p230 = scmp.ne.s32.totalorder %s219, %s222
    %p231 = scmp.eq.s32.totalorder %s20, 1
    %p232 = por %p230, %p231
    %p233 = scmp.ne.s32.totalorder %s222, %s223
    %p234 = scmp.eq.s32.totalorder %s20, 0
    %p235 = por %p233, %p234
    %p236 = scmp.ne.s32.totalorder %s222, %s223
    %p237 = scmp.eq.s32.totalorder %s21, 1
    %p238 = por %p236, %p237
    %p240 = scmp.ne.s32.totalorder %s223, %s239
    %p241 = scmp.eq.s32.totalorder %s21, 0
    %p242 = por %p240, %p241
    %p243 = scmp.le.s32.totalorder 1, %s15
    %p244 = scmp.lt.s32.totalorder %s15, 3
    %p245 = pnand %p243, %p244
    %p246 = pneg %p245
    // Predicated region
    $region9: #{net_sir_forward.1} parent=5 // pred_check
      _
    $region10: #{net_sir_forward.1} parent=5 // pred_check_branch
      %248 = sbr.rel (%p245) target = $region12
    $region11: #{net_sir_forward.1} parent=5 // pred_region
      %s249 = ssub.s32 %s15, 1
      // Predicated region
      $region13: #{net_sir_forward.1} parent=11 // pred_check
        %p250 = pneg %p62
      $region14: #{net_sir_forward.1} parent=11 // pred_check_branch
        %252 = sbr.rel (%p250) target = $region16
      $region15: #{net_sir_forward.1} parent=11 // pred_region
        _
      $region16: #{net_sir_forward.1} parent=11 // pred_fallthru
        _
      // Predicated region
      $region17: #{net_sir_forward.1} parent=11 // pred_check
        %p253 = pneg %p83
      $region18: #{net_sir_forward.1} parent=11 // pred_check_branch
        %255 = sbr.rel (%p253) target = $region20
      $region19: #{net_sir_forward.1} parent=11 // pred_region
        _
      $region20: #{net_sir_forward.1} parent=11 // pred_fallthru
        _
      // Predicated region
      $region21: #{net_sir_forward.1} parent=11 // pred_check
        %p256 = pneg %p104
      $region22: #{net_sir_forward.1} parent=11 // pred_check_branch
        %258 = sbr.rel (%p256) target = $region24
      $region23: #{net_sir_forward.1} parent=11 // pred_region
        _
      $region24: #{net_sir_forward.1} parent=11 // pred_fallthru
        _
      // Predicated region
      $region25: #{net_sir_forward.1} parent=11 // pred_check
        %p259 = pneg %p125
      $region26: #{net_sir_forward.1} parent=11 // pred_check_branch
        %261 = sbr.rel (%p259) target = $region28
      $region27: #{net_sir_forward.1} parent=11 // pred_region
        _
      $region28: #{net_sir_forward.1} parent=11 // pred_fallthru
        _
      // Predicated region
      $region29: #{net_sir_forward.1} parent=11 // pred_check
        %p262 = pneg %p146
      $region30: #{net_sir_forward.1} parent=11 // pred_check_branch
        %264 = sbr.rel (%p262) target = $region32
      $region31: #{net_sir_forward.1} parent=11 // pred_region
        _
      $region32: #{net_sir_forward.1} parent=11 // pred_fallthru
        _
      // Predicated region
      $region33: #{net_sir_forward.1} parent=11 // pred_check
        %p265 = pneg %p167
      $region34: #{net_sir_forward.1} parent=11 // pred_check_branch
        %267 = sbr.rel (%p265) target = $region36
      $region35: #{net_sir_forward.1} parent=11 // pred_region
        _
      $region36: #{net_sir_forward.1} parent=11 // pred_fallthru
        _
      // Predicated region
      $region37: #{net_sir_forward.1} parent=11 // pred_check
        %p268 = pneg %p188
      $region38: #{net_sir_forward.1} parent=11 // pred_check_branch
        %270 = sbr.rel (%p268) target = $region40
      $region39: #{net_sir_forward.1} parent=11 // pred_region
        _
      $region40: #{net_sir_forward.1} parent=11 // pred_fallthru
        _
      // Predicated region
      $region41: #{net_sir_forward.1} parent=11 // pred_check
        %p271 = pneg %p209
      $region42: #{net_sir_forward.1} parent=11 // pred_check_branch
        %273 = sbr.rel (%p271) target = $region44
      $region43: #{net_sir_forward.1} parent=11 // pred_region
        _
      $region44: #{net_sir_forward.1} parent=11 // pred_fallthru
        _
    $region12: #{net_sir_forward.1} parent=5 // pred_fallthru
      _
    %p274 = scmp.lt.s32.totalorder %s15, 2
    // Predicated region
    $region45: #{net_sir_forward.1} parent=5 // pred_check
      %p275 = pneg %p274
    $region46: #{net_sir_forward.1} parent=5 // pred_check_branch
      %277 = sbr.rel (%p275) target = $region48
    $region47: #{net_sir_forward.1} parent=5 // pred_region
      // Predicated region
      $region49: #{net_sir_forward.1} parent=47 // pred_check
        %p278 = pneg %p35
      $region50: #{net_sir_forward.1} parent=47 // pred_check_branch
        %280 = sbr.rel (%p278) target = $region52
      $region51: #{net_sir_forward.1} parent=47 // pred_region
        %s281 = smul.u32 2, %s15
        %p282 = scmp.lt.s32.totalorder %s281, 3
        %s283 = scalar_select %p282, %s281, 3
        %s284 = scalar_lea.vmem %s0, %s283
        %s285 = smul.u32 2, %s15
      $region52: #{net_sir_forward.1} parent=47 // pred_fallthru
        _
    $region48: #{net_sir_forward.1} parent=5 // pred_fallthru
      _
    %p286 = scmp.le.s32.totalorder 1, %s15
    %p287 = scmp.lt.s32.totalorder %s15, 3
    %p288 = pnand %p286, %p287
    %p289 = pneg %p288
    // Predicated region
    $region53: #{net_sir_forward.1} parent=5 // pred_check
      _
    $region54: #{net_sir_forward.1} parent=5 // pred_check_branch
      %291 = sbr.rel (%p288) target = $region56
    $region55: #{net_sir_forward.1} parent=5 // pred_region
      %s292 = ssub.s32 %s15, 1
      %s293 = smul.u32 2, %s20
      %p294 = scmp.lt.s32.totalorder %s293, 3
      %s295 = scalar_select %p294, %s293, 3
      %s296 = scalar_lea.vmem %s0, %s295
      %p297 = pneg %p41
      %p298 = pneg %p38
      %p299 = pneg %p62
      %p300 = pneg %p59
      %p301 = pneg %p83
      %p302 = pneg %p80
      %p303 = pneg %p104
      %p304 = pneg %p101
      %p305 = pneg %p125
      %p306 = pneg %p122
      %p307 = pneg %p146
      %p308 = pneg %p143
      %p309 = pneg %p167
      %p310 = pneg %p164
      %p311 = pneg %p188
      %p312 = pneg %p185
      %p313 = pneg %p209
      %p314 = pneg %p206
      %p315 = pneg %p235
      %p316 = pneg %p232
      %s317 = smul.u32 2, %s20
      %p318 = scmp.lt.s32.totalorder %s317, 3
      %s319 = scalar_select %p318, %s317, 3
      %s320 = smul.addr %s319, 4
      %s321 = scalar_lea.vmem %s9, %s320
      %s322 = smul.u32 2, %s20
      %p323 = scmp.lt.s32.totalorder %s322, 3
      %s324 = scalar_select %p323, %s322, 3
      %s325 = scalar_lea.vmem %s0, %s324
      %s326 = smul.u32 2, %s20
      %s327 = smul.u32 2, %s20
      %p328 = scmp.lt.s32.totalorder %s327, 3
      %s329 = scalar_select %p328, %s327, 3
      %s330 = smul.addr %s329, 4
      %s331 = scalar_lea.vmem %s9, %s330
      %s332 = smul.u32 2, %s20
      %v334 = vld [vmem:[%s325] sm:$0x3]
      %v335 = vld [vmem:[%s1] sm:$0xff]
      %v336 = vld [vmem:[%s1 + $0x8] sm:$0xff]
      %v337 = vld [vmem:[%s1 + $0x10] sm:$0xff]
      %v338 = vld [vmem:[%s1 + $0x18] sm:$0xff]
      %v339 = vld [vmem:[%s1 + $0x20] sm:$0xff]
      %v340 = vld [vmem:[%s1 + $0x28] sm:$0xff]
      %v341 = vld [vmem:[%s1 + $0x30] sm:$0xff]
      %v342 = vld [vmem:[%s1 + $0x38] sm:$0xff]
      %344 = vset.pattern.permute.xlu0 0
      %345 = vperm.xlu0 %344, %v335
      %v346 = vpop.permute.xlu0 %345
      %349 = vset.pattern.permute.xlu0 0
      %350 = vperm.xlu0 %349, %v336
      %v351 = vpop.permute.xlu0 %350
      %354 = vset.pattern.permute.xlu0 0
      %355 = vperm.xlu0 %354, %v337
      %v356 = vpop.permute.xlu0 %355
      %359 = vset.pattern.permute.xlu0 0
      %360 = vperm.xlu0 %359, %v338
      %v361 = vpop.permute.xlu0 %360
      %364 = vset.pattern.permute.xlu0 0
      %365 = vperm.xlu0 %364, %v339
      %v366 = vpop.permute.xlu0 %365
      %369 = vset.pattern.permute.xlu0 0
      %370 = vperm.xlu0 %369, %v340
      %v371 = vpop.permute.xlu0 %370
      %374 = vset.pattern.permute.xlu0 0
      %375 = vperm.xlu0 %374, %v341
      %v376 = vpop.permute.xlu0 %375
      %379 = vset.pattern.permute.xlu0 0
      %380 = vperm.xlu0 %379, %v342
      %v381 = vpop.permute.xlu0 %380
      %v384 = vlaneseq
      %v385 = vshrl.u32 %v384, 7
      %v386 = vsub.s32 0, %v385
      %v387 = vrot.slane %v334, %v386
      %v388 = vlaneseq
      %v389 = vshrl.u32 %v388, 7
      %v390 = vsub.s32 1, %v389
      %v391 = vrot.slane %v334, %v390
      %v394 = vmul.f32 %v346, %v387
      %v395 = vmul.f32 %v346, %v391
      %v396 = vmul.f32 %v351, %v387
      %v397 = vmul.f32 %v351, %v391
      %v398 = vmul.f32 %v356, %v387
      %v399 = vmul.f32 %v356, %v391
      %v400 = vmul.f32 %v361, %v387
      %v401 = vmul.f32 %v361, %v391
      %v402 = vmul.f32 %v366, %v387
      %v403 = vmul.f32 %v366, %v391
      %v404 = vmul.f32 %v371, %v387
      %v405 = vmul.f32 %v371, %v391
      %v406 = vmul.f32 %v376, %v387
      %v407 = vmul.f32 %v376, %v391
      %v408 = vmul.f32 %v381, %v387
      %v409 = vmul.f32 %v381, %v391
      %v410 = vld [vmem:[%s2] sm:$0xff]
      %v411 = vld [vmem:[%s2 + $0x8] sm:$0xff]
      %v412 = vld [vmem:[%s2 + $0x10] sm:$0xff]
      %v413 = vld [vmem:[%s2 + $0x18] sm:$0xff]
      %v414 = vld [vmem:[%s2 + $0x20] sm:$0xff]
      %v415 = vld [vmem:[%s2 + $0x28] sm:$0xff]
      %v416 = vld [vmem:[%s2 + $0x30] sm:$0xff]
      %v417 = vld [vmem:[%s2 + $0x38] sm:$0xff]
      %419 = vset.pattern.permute.xlu0 0
      %420 = vperm.xlu0 %419, %v410
      %v421 = vpop.permute.xlu0 %420
      %424 = vset.pattern.permute.xlu0 0
      %425 = vperm.xlu0 %424, %v411
      %v426 = vpop.permute.xlu0 %425
      %429 = vset.pattern.permute.xlu0 0
      %430 = vperm.xlu0 %429, %v412
      %v431 = vpop.permute.xlu0 %430
      %434 = vset.pattern.permute.xlu0 0
      %435 = vperm.xlu0 %434, %v413
      %v436 = vpop.permute.xlu0 %435
      %439 = vset.pattern.permute.xlu0 0
      %440 = vperm.xlu0 %439, %v414
      %v441 = vpop.permute.xlu0 %440
      %444 = vset.pattern.permute.xlu0 0
      %445 = vperm.xlu0 %444, %v415
      %v446 = vpop.permute.xlu0 %445
      %449 = vset.pattern.permute.xlu0 0
      %450 = vperm.xlu0 %449, %v416
      %v451 = vpop.permute.xlu0 %450
      %454 = vset.pattern.permute.xlu0 0
      %455 = vperm.xlu0 %454, %v417
      %v456 = vpop.permute.xlu0 %455
      %v458 = vadd.f32 %v394, %v421
      %v459 = vadd.f32 %v395, %v421
      %v460 = vadd.f32 %v396, %v426
      %v461 = vadd.f32 %v397, %v426
      %v462 = vadd.f32 %v398, %v431
      %v463 = vadd.f32 %v399, %v431
      %v464 = vadd.f32 %v400, %v436
      %v465 = vadd.f32 %v401, %v436
      %v466 = vadd.f32 %v402, %v441
      %v467 = vadd.f32 %v403, %v441
      %v468 = vadd.f32 %v404, %v446
      %v469 = vadd.f32 %v405, %v446
      %v470 = vadd.f32 %v406, %v451
      %v471 = vadd.f32 %v407, %v451
      %v472 = vadd.f32 %v408, %v456
      %v473 = vadd.f32 %v409, %v456
      %v474 = vtanh.pop %v458
      %v475 = vtanh.pop %v459
      %v476 = vtanh.pop %v460
      %v477 = vtanh.pop %v461
      %v478 = vtanh.pop %v462
      %v479 = vtanh.pop %v463
      %v480 = vtanh.pop %v464
      %v481 = vtanh.pop %v465
      %v482 = vtanh.pop %v466
      %v483 = vtanh.pop %v467
      %v484 = vtanh.pop %v468
      %v485 = vtanh.pop %v469
      %v486 = vtanh.pop %v470
      %v487 = vtanh.pop %v471
      %v488 = vtanh.pop %v472
      %v489 = vtanh.pop %v473
      %v490 = vld [vmem:[%s3] sm:$0xf]
      %v491 = vld [vmem:[%s3 + $0x4] sm:$0xf]
      %v492 = vld [vmem:[%s3 + $0x8] sm:$0xf]
      %v493 = vld [vmem:[%s3 + $0xc] sm:$0xf]
      %v494 = vld [vmem:[%s3 + $0x10] sm:$0xf]
      %v495 = vld [vmem:[%s3 + $0x14] sm:$0xf]
      %v496 = vld [vmem:[%s3 + $0x18] sm:$0xf]
      %v497 = vld [vmem:[%s3 + $0x1c] sm:$0xf]
      %v498 = vpack.c.bf16 %v476, %v474
      %v499 = vpack.c.bf16 %v477, %v475
      %v500 = vpack.c.bf16 %v480, %v478
      %v501 = vpack.c.bf16 %v481, %v479
      %v502 = vpack.c.bf16 %v484, %v482
      %v503 = vpack.c.bf16 %v485, %v483
      %v504 = vpack.c.bf16 %v488, %v486
      %v505 = vpack.c.bf16 %v489, %v487
      %v506 = vld [vmem:[%s4] sm:$0xff]
      %v507 = vld [vmem:[%s4 + $0x8] sm:$0xff]
      %v508 = vld [vmem:[%s4 + $0x10] sm:$0xff]
      %v509 = vld [vmem:[%s4 + $0x18] sm:$0xff]
      %v510 = vld [vmem:[%s4 + $0x20] sm:$0xff]
      %v511 = vld [vmem:[%s4 + $0x28] sm:$0xff]
      %v512 = vld [vmem:[%s4 + $0x30] sm:$0xff]
      %v513 = vld [vmem:[%s4 + $0x38] sm:$0xff]
      %515 = vset.pattern.permute.xlu0 0
      %516 = vperm.xlu0 %515, %v506
      %v517 = vpop.permute.xlu0 %516
      %520 = vset.pattern.permute.xlu0 0
      %521 = vperm.xlu0 %520, %v507
      %v522 = vpop.permute.xlu0 %521
      %525 = vset.pattern.permute.xlu0 0
      %526 = vperm.xlu0 %525, %v508
      %v527 = vpop.permute.xlu0 %526
      %530 = vset.pattern.permute.xlu0 0
      %531 = vperm.xlu0 %530, %v509
      %v532 = vpop.permute.xlu0 %531
      %535 = vset.pattern.permute.xlu0 0
      %536 = vperm.xlu0 %535, %v510
      %v537 = vpop.permute.xlu0 %536
      %540 = vset.pattern.permute.xlu0 0
      %541 = vperm.xlu0 %540, %v511
      %v542 = vpop.permute.xlu0 %541
      %545 = vset.pattern.permute.xlu0 0
      %546 = vperm.xlu0 %545, %v512
      %v547 = vpop.permute.xlu0 %546
      %550 = vset.pattern.permute.xlu0 0
      %551 = vperm.xlu0 %550, %v513
      %v552 = vpop.permute.xlu0 %551
      %v562 = vunpack.c.l.b16 %v490
      %v563 = vunpack.c.l.b16 %v491
      %v564 = vunpack.c.l.b16 %v492
      %v565 = vunpack.c.l.b16 %v493
      %v566 = vunpack.c.l.b16 %v494
      %v567 = vunpack.c.l.b16 %v495
      %v568 = vunpack.c.l.b16 %v496
      %v569 = vunpack.c.l.b16 %v497
      %v570 = vpack.c.b16 %v563, %v562
      %v571 = vpack.c.b16 %v565, %v564
      %v572 = vpack.c.b16 %v567, %v566
      %v573 = vpack.c.b16 %v569, %v568
      %vm574 = vcmask 523264
      %v576 = vsel %vm574, %v570, 0
      %v579 = vsel %vm574, %v571, 0
      %v582 = vsel %vm574, %v572, 0
      %v585 = vsel %vm574, %v573, 0
      %587 = vmatprep.subr.bf16.mxu0 %v499
      %588 = vmatpush1.bf16.msra.mxu0 %v498
      %589 = vmatprep.subr.bf16.mxu0 %v501
      %590 = vmatpush1.bf16.msra.mxu0 %v500
      %591 = vmatprep.subr.bf16.mxu0 %v503
      %592 = vmatpush1.bf16.msra.mxu0 %v502
      %593 = vmatprep.subr.bf16.mxu0 %v505
      %594 = vmatpush1.bf16.msra.mxu0 %v504
      %595 = vmatprep.subr.bf16.mxu0 0
      %596 = vmatpush1.bf16.msra.mxu0 0
      %597 = vmatprep.subr.bf16.mxu0 0
      %598 = vmatpush1.bf16.msra.mxu0 0
      %599 = vmatprep.subr.bf16.mxu0 0
      %600 = vmatpush1.bf16.msra.mxu0 0
      %601 = vmatprep.subr.bf16.mxu0 0
      %602 = vmatpush1.bf16.msra.mxu0 0
      %603 = vmatprep.subr.bf16.mxu0 0
      %604 = vmatpush1.bf16.msra.mxu0 0
      %605 = vmatprep.subr.bf16.mxu0 0
      %606 = vmatpush1.bf16.msra.mxu0 0
      %607 = vmatprep.subr.bf16.mxu0 0
      %608 = vmatpush1.bf16.msra.mxu0 0
      %609 = vmatprep.subr.bf16.mxu0 0
      %610 = vmatpush1.bf16.msra.mxu0 0
      %611 = vmatprep.subr.bf16.mxu0 0
      %612 = vmatpush1.bf16.msra.mxu0 0
      %613 = vmatprep.subr.bf16.mxu0 0
      %614 = vmatpush1.bf16.msra.mxu0 0
      %615 = vmatprep.subr.bf16.mxu0 0
      %616 = vmatpush1.bf16.msra.mxu0 0
      %617 = vmatprep.subr.bf16.mxu0 0
      %618 = vmatpush1.bf16.msra.mxu0 0
      %619 = vmatprep.mubr.bf16.mxu0 0
      %620 = vmatmul.mubr.bf16.gmra.mrb[0].mxu0 %v576
      %v621 = vpop.f32.mrb[0].mxu0
      %v622 = vadd.f32 %v517, %v621
      %v623 = vpop.f32.mrb[0].mxu0
      %v624 = vadd.f32 %v517, %v623
      %v625 = vpop.f32.mrb[0].mxu0
      %v626 = vadd.f32 %v522, %v625
      %v627 = vpop.f32.mrb[0].mxu0
      %v628 = vadd.f32 %v522, %v627
      %629 = vmatprep.mubr.bf16.mxu0 0
      %630 = vmatmul.mubr.bf16.gmra.mrb[0].mxu0 %v579
      %v631 = vpop.f32.mrb[0].mxu0
      %v632 = vadd.f32 %v527, %v631
      %v633 = vpop.f32.mrb[0].mxu0
      %v634 = vadd.f32 %v527, %v633
      %v635 = vpop.f32.mrb[0].mxu0
      %v636 = vadd.f32 %v532, %v635
      %v637 = vpop.f32.mrb[0].mxu0
      %v638 = vadd.f32 %v532, %v637
      %639 = vmatprep.mubr.bf16.mxu0 0
      %640 = vmatmul.mubr.bf16.gmra.mrb[0].mxu0 %v582
      %v641 = vpop.f32.mrb[0].mxu0
      %v642 = vadd.f32 %v537, %v641
      %v643 = vpop.f32.mrb[0].mxu0
      %v644 = vadd.f32 %v537, %v643
      %v645 = vpop.f32.mrb[0].mxu0
      %v646 = vadd.f32 %v542, %v645
      %v647 = vpop.f32.mrb[0].mxu0
      %v648 = vadd.f32 %v542, %v647
      %649 = vmatprep.mubr.bf16.mxu0 0
      %650 = vmatmul.mubr.bf16.gmra.mrb[0].mxu0 %v585
      %v651 = vpop.f32.mrb[0].mxu0
      %v652 = vadd.f32 %v547, %v651
      %v653 = vpop.f32.mrb[0].mxu0
      %v654 = vadd.f32 %v547, %v653
      %v655 = vpop.f32.mrb[0].mxu0
      %v656 = vadd.f32 %v552, %v655
      %v657 = vpop.f32.mrb[0].mxu0
      %v658 = vadd.f32 %v552, %v657
      %659 = vdwg.mxu0
      %v660 = vtanh.pop %v622
      %v661 = vtanh.pop %v624
      %v662 = vtanh.pop %v626
      %v663 = vtanh.pop %v628
      %v664 = vtanh.pop %v632
      %v665 = vtanh.pop %v634
      %v666 = vtanh.pop %v636
      %v667 = vtanh.pop %v638
      %v668 = vtanh.pop %v642
      %v669 = vtanh.pop %v644
      %v670 = vtanh.pop %v646
      %v671 = vtanh.pop %v648
      %v672 = vtanh.pop %v652
      %v673 = vtanh.pop %v654
      %v674 = vtanh.pop %v656
      %v675 = vtanh.pop %v658
      %v676 = vld [vmem:[%s5] sm:$0xf]
      %v677 = vld [vmem:[%s5 + $0x4] sm:$0xf]
      %v678 = vld [vmem:[%s5 + $0x8] sm:$0xf]
      %v679 = vld [vmem:[%s5 + $0xc] sm:$0xf]
      %v680 = vld [vmem:[%s5 + $0x10] sm:$0xf]
      %v681 = vld [vmem:[%s5 + $0x14] sm:$0xf]
      %v682 = vld [vmem:[%s5 + $0x18] sm:$0xf]
      %v683 = vld [vmem:[%s5 + $0x1c] sm:$0xf]
      %v684 = vpack.c.bf16 %v662, %v660
      %v685 = vpack.c.bf16 %v663, %v661
      %v686 = vpack.c.bf16 %v666, %v664
      %v687 = vpack.c.bf16 %v667, %v665
      %v688 = vpack.c.bf16 %v670, %v668
      %v689 = vpack.c.bf16 %v671, %v669
      %v690 = vpack.c.bf16 %v674, %v672
      %v691 = vpack.c.bf16 %v675, %v673
      %v692 = vld [vmem:[%s6] sm:$0xff]
      %v693 = vld [vmem:[%s6 + $0x8] sm:$0xff]
      %v694 = vld [vmem:[%s6 + $0x10] sm:$0xff]
      %v695 = vld [vmem:[%s6 + $0x18] sm:$0xff]
      %v696 = vld [vmem:[%s6 + $0x20] sm:$0xff]
      %v697 = vld [vmem:[%s6 + $0x28] sm:$0xff]
      %v698 = vld [vmem:[%s6 + $0x30] sm:$0xff]
      %v699 = vld [vmem:[%s6 + $0x38] sm:$0xff]
      %701 = vset.pattern.permute.xlu0 0
      %702 = vperm.xlu0 %701, %v692
      %v703 = vpop.permute.xlu0 %702
      %706 = vset.pattern.permute.xlu0 0
      %707 = vperm.xlu0 %706, %v693
      %v708 = vpop.permute.xlu0 %707
      %711 = vset.pattern.permute.xlu0 0
      %712 = vperm.xlu0 %711, %v694
      %v713 = vpop.permute.xlu0 %712
      %716 = vset.pattern.permute.xlu0 0
      %717 = vperm.xlu0 %716, %v695
      %v718 = vpop.permute.xlu0 %717
      %721 = vset.pattern.permute.xlu0 0
      %722 = vperm.xlu0 %721, %v696
      %v723 = vpop.permute.xlu0 %722
      %726 = vset.pattern.permute.xlu0 0
      %727 = vperm.xlu0 %726, %v697
      %v728 = vpop.permute.xlu0 %727
      %731 = vset.pattern.permute.xlu0 0
      %732 = vperm.xlu0 %731, %v698
      %v733 = vpop.permute.xlu0 %732
      %736 = vset.pattern.permute.xlu0 0
      %737 = vperm.xlu0 %736, %v699
      %v738 = vpop.permute.xlu0 %737
      %v748 = vunpack.c.l.b16 %v676
      %v749 = vunpack.c.l.b16 %v677
      %v750 = vunpack.c.l.b16 %v678
      %v751 = vunpack.c.l.b16 %v679
      %v752 = vunpack.c.l.b16 %v680
      %v753 = vunpack.c.l.b16 %v681
      %v754 = vunpack.c.l.b16 %v682
      %v755 = vunpack.c.l.b16 %v683
      %v756 = vpack.c.b16 %v749, %v748
      %v757 = vpack.c.b16 %v751, %v750
      %v758 = vpack.c.b16 %v753, %v752
      %v759 = vpack.c.b16 %v755, %v754
      %v761 = vsel %vm574, %v756, 0
      %v764 = vsel %vm574, %v757, 0
      %v767 = vsel %vm574, %v758, 0
      %v770 = vsel %vm574, %v759, 0
      %772 = vmatprep.subr.bf16.mxu0 %v685
      %773 = vmatpush1.bf16.msra.mxu0 %v684
      %774 = vmatprep.subr.bf16.mxu0 %v687
      %775 = vmatpush1.bf16.msra.mxu0 %v686
      %776 = vmatprep.subr.bf16.mxu0 %v689
      %777 = vmatpush1.bf16.msra.mxu0 %v688
      %778 = vmatprep.subr.bf16.mxu0 %v691
      %779 = vmatpush1.bf16.msra.mxu0 %v690
      %780 = vmatprep.subr.bf16.mxu0 0
      %781 = vmatpush1.bf16.msra.mxu0 0
      %782 = vmatprep.subr.bf16.mxu0 0
      %783 = vmatpush1.bf16.msra.mxu0 0
      %784 = vmatprep.subr.bf16.mxu0 0
      %785 = vmatpush1.bf16.msra.mxu0 0
      %786 = vmatprep.subr.bf16.mxu0 0
      %787 = vmatpush1.bf16.msra.mxu0 0
      %788 = vmatprep.subr.bf16.mxu0 0
      %789 = vmatpush1.bf16.msra.mxu0 0
      %790 = vmatprep.subr.bf16.mxu0 0
      %791 = vmatpush1.bf16.msra.mxu0 0
      %792 = vmatprep.subr.bf16.mxu0 0
      %793 = vmatpush1.bf16.msra.mxu0 0
      %794 = vmatprep.subr.bf16.mxu0 0
      %795 = vmatpush1.bf16.msra.mxu0 0
      %796 = vmatprep.subr.bf16.mxu0 0
      %797 = vmatpush1.bf16.msra.mxu0 0
      %798 = vmatprep.subr.bf16.mxu0 0
      %799 = vmatpush1.bf16.msra.mxu0 0
      %800 = vmatprep.subr.bf16.mxu0 0
      %801 = vmatpush1.bf16.msra.mxu0 0
      %802 = vmatprep.subr.bf16.mxu0 0
      %803 = vmatpush1.bf16.msra.mxu0 0
      %804 = vmatprep.mubr.bf16.mxu0 0
      %805 = vmatmul.mubr.bf16.gmra.mrb[0].mxu0 %v761
      %v806 = vpop.f32.mrb[0].mxu0
      %v807 = vadd.f32 %v703, %v806
      %v808 = vpop.f32.mrb[0].mxu0
      %v809 = vadd.f32 %v703, %v808
      %v810 = vpop.f32.mrb[0].mxu0
      %v811 = vadd.f32 %v708, %v810
      %v812 = vpop.f32.mrb[0].mxu0
      %v813 = vadd.f32 %v708, %v812
      %814 = vmatprep.mubr.bf16.mxu0 0
      %815 = vmatmul.mubr.bf16.gmra.mrb[0].mxu0 %v764
      %v816 = vpop.f32.mrb[0].mxu0
      %v817 = vadd.f32 %v713, %v816
      %v818 = vpop.f32.mrb[0].mxu0
      %v819 = vadd.f32 %v713, %v818
      %v820 = vpop.f32.mrb[0].mxu0
      %v821 = vadd.f32 %v718, %v820
      %v822 = vpop.f32.mrb[0].mxu0
      %v823 = vadd.f32 %v718, %v822
      %824 = vmatprep.mubr.bf16.mxu0 0
      %825 = vmatmul.mubr.bf16.gmra.mrb[0].mxu0 %v767
      %v826 = vpop.f32.mrb[0].mxu0
      %v827 = vadd.f32 %v723, %v826
      %v828 = vpop.f32.mrb[0].mxu0
      %v829 = vadd.f32 %v723, %v828
      %v830 = vpop.f32.mrb[0].mxu0
      %v831 = vadd.f32 %v728, %v830
      %v832 = vpop.f32.mrb[0].mxu0
      %v833 = vadd.f32 %v728, %v832
      %834 = vmatprep.mubr.bf16.mxu0 0
      %835 = vmatmul.mubr.bf16.gmra.mrb[0].mxu0 %v770
      %v836 = vpop.f32.mrb[0].mxu0
      %v837 = vadd.f32 %v733, %v836
      %v838 = vpop.f32.mrb[0].mxu0
      %v839 = vadd.f32 %v733, %v838
      %v840 = vpop.f32.mrb[0].mxu0
      %v841 = vadd.f32 %v738, %v840
      %v842 = vpop.f32.mrb[0].mxu0
      %v843 = vadd.f32 %v738, %v842
      %844 = vdwg.mxu0
      %v845 = vtanh.pop %v807
      %v846 = vtanh.pop %v809
      %v847 = vtanh.pop %v811
      %v848 = vtanh.pop %v813
      %v849 = vtanh.pop %v817
      %v850 = vtanh.pop %v819
      %v851 = vtanh.pop %v821
      %v852 = vtanh.pop %v823
      %v853 = vtanh.pop %v827
      %v854 = vtanh.pop %v829
      %v855 = vtanh.pop %v831
      %v856 = vtanh.pop %v833
      %v857 = vtanh.pop %v837
      %v858 = vtanh.pop %v839
      %v859 = vtanh.pop %v841
      %v860 = vtanh.pop %v843
      %v861 = vld [vmem:[%s7] sm:$0x3]
      %v862 = vpack.c.bf16 %v847, %v845
      %v863 = vpack.c.bf16 %v848, %v846
      %v864 = vpack.c.bf16 %v851, %v849
      %v865 = vpack.c.bf16 %v852, %v850
      %v866 = vpack.c.bf16 %v855, %v853
      %v867 = vpack.c.bf16 %v856, %v854
      %v868 = vpack.c.bf16 %v859, %v857
      %v869 = vpack.c.bf16 %v860, %v858
      %v870 = vld [vmem:[%s8] sm:$0x7]
      %872 = vset.pattern.permute.xlu0 0
      %873 = vperm.xlu0 %872, %v870
      %v874 = vpop.permute.xlu0 %873
      %v877 = vsel %vm574, %v861, 0
      %879 = vmatprep.subr.bf16.mxu0 %v863
      %880 = vmatpush1.bf16.msra.mxu0 %v862
      %881 = vmatprep.subr.bf16.mxu0 %v865
      %882 = vmatpush1.bf16.msra.mxu0 %v864
      %883 = vmatprep.subr.bf16.mxu0 %v867
      %884 = vmatpush1.bf16.msra.mxu0 %v866
      %885 = vmatprep.subr.bf16.mxu0 %v869
      %886 = vmatpush1.bf16.msra.mxu0 %v868
      %887 = vmatprep.subr.bf16.mxu0 0
      %888 = vmatpush1.bf16.msra.mxu0 0
      %889 = vmatprep.subr.bf16.mxu0 0
      %890 = vmatpush1.bf16.msra.mxu0 0
      %891 = vmatprep.subr.bf16.mxu0 0
      %892 = vmatpush1.bf16.msra.mxu0 0
      %893 = vmatprep.subr.bf16.mxu0 0
      %894 = vmatpush1.bf16.msra.mxu0 0
      %895 = vmatprep.subr.bf16.mxu0 0
      %896 = vmatpush1.bf16.msra.mxu0 0
      %897 = vmatprep.subr.bf16.mxu0 0
      %898 = vmatpush1.bf16.msra.mxu0 0
      %899 = vmatprep.subr.bf16.mxu0 0
      %900 = vmatpush1.bf16.msra.mxu0 0
      %901 = vmatprep.subr.bf16.mxu0 0
      %902 = vmatpush1.bf16.msra.mxu0 0
      %903 = vmatprep.subr.bf16.mxu0 0
      %904 = vmatpush1.bf16.msra.mxu0 0
      %905 = vmatprep.subr.bf16.mxu0 0
      %906 = vmatpush1.bf16.msra.mxu0 0
      %907 = vmatprep.subr.bf16.mxu0 0
      %908 = vmatpush1.bf16.msra.mxu0 0
      %909 = vmatprep.subr.bf16.mxu0 0
      %910 = vmatpush1.bf16.msra.mxu0 0
      %911 = vmatprep.mubr.bf16.mxu0 0
      %912 = vmatmul.mubr.bf16.gmra.mrb[0].mxu0 %v877
      %v913 = vpop.f32.mrb[0].mxu0
      %v914 = vadd.f32 %v874, %v913
      %v915 = vpop.f32.mrb[0].mxu0
      %v916 = vadd.f32 %v874, %v915
      %v917 = vpop.f32.mrb[0].mxu0
      %v918 = vpop.f32.mrb[0].mxu0
      %919 = vdwg.mxu0
      %v920 = vxor.u32 %v914, 2147483648
      %v921 = vxor.u32 %v916, 2147483648
      %v922 = vmul.f32 %v920, 1.442695
      %v923 = vpow.pop %v922
      %v924 = vmul.f32 %v921, 1.442695
      %v925 = vpow.pop %v924
      %v926 = vadd.f32 %v923, 1.0
      %v927 = vadd.f32 %v925, 1.0
      %v928 = vrcp.pop %v926
      %v929 = vmul.f32 1.0, %v928
      %v930 = vrcp.pop %v927
      %v931 = vmul.f32 1.0, %v930
      %v934 = vcombine.low %v929, %v931
      %936 = vst [vmem:[%s331] sm:$0x77] %v934
      %s937 = smul.u32 2, %s20
      %p938 = scmp.lt.s32.totalorder %s937, 3
      %s939 = scalar_select %p938, %s937, 3
      %s940 = smul.addr %s939, 4
      %s941 = scalar_lea.vmem %s9, %s940
      // Predicated region
      $region57: #{net_sir_forward.1} parent=55 // pred_check
        %p942 = pneg %p232
      $region58: #{net_sir_forward.1} parent=55 // pred_check_branch
        %944 = sbr.rel (%p942) target = $region60
      $region59: #{net_sir_forward.1} parent=55 // pred_region
        %s945 = smul.u32 2, %s20
      $region60: #{net_sir_forward.1} parent=55 // pred_fallthru
        _
    $region56: #{net_sir_forward.1} parent=5 // pred_fallthru
      _
    %p946 = scmp.le.s32.totalorder 2, %s15
    // Predicated region
    $region61: #{net_sir_forward.1} parent=5 // pred_check
      %p947 = pneg %p946
    $region62: #{net_sir_forward.1} parent=5 // pred_check_branch
      %949 = sbr.rel (%p947) target = $region64
    $region63: #{net_sir_forward.1} parent=5 // pred_region
      %s950 = ssub.s32 %s15, 2
      // Predicated region
      $region65: #{net_sir_forward.1} parent=63 // pred_check
        %p951 = pneg %p238
      $region66: #{net_sir_forward.1} parent=63 // pred_check_branch
        %953 = sbr.rel (%p951) target = $region68
      $region67: #{net_sir_forward.1} parent=63 // pred_region
        %s954 = smul.u32 2, %s21
        %p955 = scmp.lt.s32.totalorder %s954, 3
        %s956 = scalar_select %p955, %s954, 3
        %s957 = smul.addr %s956, 4
        %s958 = scalar_lea.vmem %s9, %s957
      $region68: #{net_sir_forward.1} parent=63 // pred_fallthru
        _
    $region64: #{net_sir_forward.1} parent=5 // pred_fallthru
      _
  $region6: #{net_sir_forward.1} parent=0 // loop_footer
    %s19 = sadd.s32 1, %s15
  $region7: #{net_sir_forward.1} parent=0 // loop_footer_branch
    %14 = sbr.rel target = $region3
  $region8: #{net_sir_forward.1} parent=0 // loop_exit
    _

</llo_original>
